<compile_context>
chip_gen: v6e
topology: v6e:2x2x1
jax: 0.10.0
libtpu: 0.0.40
codegen_flags: <defaults>
</compile_context>

<pallas_src>
import jax
import jax.numpy as jnp
from jax.experimental import pallas as pl
from jax.experimental.pallas import tpu as pltpu


# ----------------------------- config ---------------------------------------
WIDE_FEATURE_SIZE = 50
EMBEDDING_DIM = 32
HIDDEN_DIMS = (128, 64, 32)
NUM_NUMERICAL = 10
MAX_USER_ID = 10000
MAX_SHOP_ID = 1000
MAX_CATEGORY_ID = 50

DEEP_INPUT_DIM = EMBEDDING_DIM * 3 + NUM_NUMERICAL        # 106
DEEP_START = WIDE_FEATURE_SIZE                            # 50
ONES_COL = DEEP_START + DEEP_INPUT_DIM                    # 156 (bias carrier)
COMBINED_DIM = 160                                        # lane-padded width


def _round_up(x, m):
    return ((x + m - 1) // m) * m


# ----------------------------- kernel ---------------------------------------
def wide_deep_kernel(
    x_ref,        # [TB, 160] bf16   combined (wide | deep | ones | pad)
    w1_ref,       # [160, 128] bf16  deep layer 1 (zero rows on wide/pad cols)
    b1_ref,       # [1, 128]   f32
    w2_ref,       # [128, 64]  bf16
    b2_ref,       # [1, 64]    f32
    w3_ref,       # [64, 32]   bf16
    b3_ref,       # [1, 32]    f32
    wwide_ref,    # [160, 1]   bf16  wide weights * wf_wide, row 156 = folded bias
    wfinal_ref,   # [32, 1]    bf16  final weights for the deep output
    out_ref,      # [TB, 1]    f32
):
    f32 = jnp.float32
    bf16 = jnp.bfloat16

    x = x_ref[...]                                                     # bf16

    # Wide branch (already scaled by the final layer's wide weight; the global
    # bias rides on the ones-column at index 156).
    wide = jnp.dot(x, wwide_ref[...], preferred_element_type=f32)      # [TB, 1]

    # Deep MLP: Linear+ReLU x3 (bf16 matmuls, f32 accumulation, f32 bias).
    h = jnp.dot(x, w1_ref[...], preferred_element_type=f32) + b1_ref[...]
    h = jnp.maximum(h, 0.0).astype(bf16)
    h = jnp.dot(h, w2_ref[...], preferred_element_type=f32) + b2_ref[...]
    h = jnp.maximum(h, 0.0).astype(bf16)
    h = jnp.dot(h, w3_ref[...], preferred_element_type=f32) + b3_ref[...]
    h = jnp.maximum(h, 0.0).astype(bf16)                               # [TB, 32]

    logit = wide + jnp.dot(h, wfinal_ref[...], preferred_element_type=f32)
    out_ref[...] = jax.nn.sigmoid(logit)


# ----------------------------- packing / glue --------------------------------
def pack_params(params):
    """Fold the final linear's wide column + all scalar biases into the packed
    kernel weights; cast matmul weights to bf16."""
    f32, bf16 = jnp.float32, jnp.bfloat16
    wf_wide = params["w_final"][0, 0]                 # scalar (final wt. on wide)
    wf_deep = params["w_final"][1:, :]                # [32, 1]
    bias_final = params["b_wide"][0] * wf_wide + params["b_final"][0]

    w1c = jnp.zeros((COMBINED_DIM, HIDDEN_DIMS[0]), f32)
    w1c = w1c.at[DEEP_START:DEEP_START + DEEP_INPUT_DIM, :].set(params["w1"])

    wwc = jnp.zeros((COMBINED_DIM, 1), f32)
    wwc = wwc.at[:WIDE_FEATURE_SIZE, :].set(params["w_wide"] * wf_wide)
    wwc = wwc.at[ONES_COL, 0].set(bias_final)         # bias via ones-column

    return {
        "w1c": w1c.astype(bf16),
        "b1": params["b1"].astype(f32),
        "w2": params["w2"].astype(bf16),
        "b2": params["b2"].astype(f32),
        "w3": params["w3"].astype(bf16),
        "b3": params["b3"].astype(f32),
        "wwc": wwc.astype(bf16),
        "wfd": wf_deep.astype(bf16),
    }


def build_combined_input(params, wide_features, user_ids, shop_ids,
                         category_ids, numerical_features):
    user_emb = jnp.take(params["user_emb"], user_ids, axis=0)     # [B, 32]
    shop_emb = jnp.take(params["shop_emb"], shop_ids, axis=0)     # [B, 32]
    cat_emb = jnp.take(params["cat_emb"], category_ids, axis=0)   # [B, 32]
    B = wide_features.shape[0]
    ones = jnp.ones((B, 1), jnp.float32)
    pad = jnp.zeros((B, COMBINED_DIM - ONES_COL - 1), jnp.float32)
    x = jnp.concatenate(
        [wide_features.astype(jnp.float32), user_emb, shop_emb, cat_emb,
         numerical_features.astype(jnp.float32), ones, pad], axis=1)
    return x.astype(jnp.bfloat16)                                  # [B, 160]


# ----------------------------- wrapper ---------------------------------------
def wide_and_deep_forward(params, wide_features, user_ids, shop_ids,
                          category_ids, numerical_features, *, block_b=4096):
    packed = pack_params(params)
    x = build_combined_input(params, wide_features, user_ids, shop_ids,
                             category_ids, numerical_features)

    B = x.shape[0]
    tb = min(block_b, _round_up(B, 128))          # batch tile (rows per step)
    b_pad = _round_up(B, tb)
    if b_pad != B:
        x = jnp.pad(x, ((0, b_pad - B), (0, 0)))
    grid = (b_pad // tb,)

    act_map = lambda i: (i, 0)
    const_map = lambda i: (0, 0)

    in_specs = [
        pl.BlockSpec((tb, COMBINED_DIM), act_map),          # activations
        pl.BlockSpec(packed["w1c"].shape, const_map),
        pl.BlockSpec(packed["b1"].shape, const_map),
        pl.BlockSpec(packed["w2"].shape, const_map),
        pl.BlockSpec(packed["b2"].shape, const_map),
        pl.BlockSpec(packed["w3"].shape, const_map),
        pl.BlockSpec(packed["b3"].shape, const_map),
        pl.BlockSpec(packed["wwc"].shape, const_map),
        pl.BlockSpec(packed["wfd"].shape, const_map),
    ]

    out = pl.pallas_call(
        wide_deep_kernel,
        out_shape=jax.ShapeDtypeStruct((b_pad, 1), jnp.float32),
        grid=grid,
        in_specs=in_specs,
        out_specs=pl.BlockSpec((tb, 1), act_map),
        compiler_params=pltpu.CompilerParams(
            dimension_semantics=("parallel",),
            vmem_limit_bytes=32 << 20,          # safe on v5e/v6e/v7x
        ),
    )(x, packed["w1c"], packed["b1"], packed["w2"], packed["b2"],
      packed["w3"], packed["b3"], packed["wwc"], packed["wfd"])

    return out[:B]


# ----------------------------- params ---------------------------------------
def xavier_uniform(key, fan_in, fan_out):
    bound = (6.0 / (fan_in + fan_out)) ** 0.5
    # stored transposed as [fan_in, fan_out] for x @ W
    return jax.random.uniform(key, (fan_in, fan_out), dtype=jnp.float32,
                              minval=-bound, maxval=bound)


def init_params(key):
    keys = jax.random.split(key, 9)
    p = {}
    p["user_emb"] = 0.1 * jax.random.normal(keys[0], (MAX_USER_ID, EMBEDDING_DIM), jnp.float32)
    p["shop_emb"] = 0.1 * jax.random.normal(keys[1], (MAX_SHOP_ID, EMBEDDING_DIM), jnp.float32)
    p["cat_emb"] = 0.1 * jax.random.normal(keys[2], (MAX_CATEGORY_ID, EMBEDDING_DIM), jnp.float32)
    p["w_wide"] = xavier_uniform(keys[3], WIDE_FEATURE_SIZE, 1)          # [50, 1]
    p["b_wide"] = jnp.zeros((1,), jnp.float32)
    dims = (DEEP_INPUT_DIM,) + HIDDEN_DIMS
    for i in range(3):
        p[f"w{i + 1}"] = xavier_uniform(keys[4 + i], dims[i], dims[i + 1])
        p[f"b{i + 1}"] = jnp.zeros((1, dims[i + 1]), jnp.float32)
    p["w_final"] = xavier_uniform(keys[7], HIDDEN_DIMS[-1] + 1, 1)       # [33, 1]
    p["b_final"] = jnp.zeros((1,), jnp.float32)
    return p


# ----------------------------- references ------------------------------------
def reference_forward_bf16(params, wide_features, user_ids, shop_ids,
                           category_ids, numerical_features):
    """Pure-JAX reference with the same packed bf16 weights / bf16 activations."""
    f32, bf16 = jnp.float32, jnp.bfloat16
    packed = pack_params(params)
    x = build_combined_input(params, wide_features, user_ids, shop_ids,
                             category_ids, numerical_features)
    wide = jnp.dot(x, packed["wwc"], preferred_element_type=f32)
    h = jnp.maximum(jnp.dot(x, packed["w1c"], preferred_element_type=f32) + packed["b1"], 0.0).astype(bf16)
    h = jnp.maximum(jnp.dot(h, packed["w2"], preferred_element_type=f32) + packed["b2"], 0.0).astype(bf16)
    h = jnp.maximum(jnp.dot(h, packed["w3"], preferred_element_type=f32) + packed["b3"], 0.0).astype(bf16)
    logit = wide + jnp.dot(h, packed["wfd"], preferred_element_type=f32)
    return jax.nn.sigmoid(logit)


def reference_forward_f32(params, wide_features, user_ids, shop_ids,
                          category_ids, numerical_features):
    """Full-precision reference matching the original PyTorch module math."""
    user_emb = jnp.take(params["user_emb"], user_ids, axis=0)
    shop_emb = jnp.take(params["shop_emb"], shop_ids, axis=0)
    cat_emb = jnp.take(params["cat_emb"], category_ids, axis=0)
    deep_x = jnp.concatenate([user_emb, shop_emb, cat_emb, numerical_features], axis=1)

    wide_out = wide_features @ params["w_wide"] + params["b_wide"]
    h = jnp.maximum(deep_x @ params["w1"] + params["b1"], 0.0)
    h = jnp.maximum(h @ params["w2"] + params["b2"], 0.0)
    h = jnp.maximum(h @ params["w3"] + params["b3"], 0.0)
    combined = jnp.concatenate([wide_out, h], axis=1)                  # [B, 33]
    logit = combined @ params["w_final"] + params["b_final"]
    return jax.nn.sigmoid(logit)


# ----------------------------- main ------------------------------------------
if __name__ == "__main__":
    key = jax.random.PRNGKey(0)
    pkey, dkey = jax.random.split(key)
    params = init_params(pkey)

    B = 8
    k1, k2, k3, k4, k5 = jax.random.split(dkey, 5)
    wide_features = jax.random.normal(k1, (B, WIDE_FEATURE_SIZE), jnp.float32)
    user_ids = jax.random.randint(k2, (B,), 0, MAX_USER_ID, jnp.int32)
    shop_ids = jax.random.randint(k3, (B,), 0, MAX_SHOP_ID, jnp.int32)
    category_ids = jax.random.randint(k4, (B,), 0, MAX_CATEGORY_ID, jnp.int32)
    numerical_features = jax.random.normal(k5, (B, NUM_NUMERICAL), jnp.float32)

    out = wide_and_deep_forward(
        params, wide_features, user_ids, shop_ids, category_ids, numerical_features
    )
    out = jax.block_until_ready(out)
    assert out.shape == (B, 1)

    ref_bf16 = reference_forward_bf16(
        params, wide_features, user_ids, shop_ids, category_ids, numerical_features
    )
    ref_f32 = reference_forward_f32(
        params, wide_features, user_ids, shop_ids, category_ids, numerical_features
    )
    assert jnp.allclose(out, ref_bf16, atol=2e-3, rtol=2e-3), "mismatch vs bf16 reference"
    assert jnp.allclose(out, ref_f32, atol=2e-2, rtol=2e-2), "mismatch vs f32 reference"

    print("KERNEL_OK")
</pallas_src>

<mosaic_0001>
module attributes {stable_mosaic.version = 11 : i64} {
  func.func @wide_deep_kernel(%arg0: i32, %arg1: memref<128x160xbf16, #tpu.memory_space<vmem>>, %arg2: memref<160x128xbf16, #tpu.memory_space<vmem>>, %arg3: memref<1x128xf32, #tpu.memory_space<vmem>>, %arg4: memref<128x64xbf16, #tpu.memory_space<vmem>>, %arg5: memref<1x64xf32, #tpu.memory_space<vmem>>, %arg6: memref<64x32xbf16, #tpu.memory_space<vmem>>, %arg7: memref<1x32xf32, #tpu.memory_space<vmem>>, %arg8: memref<160x1xbf16, #tpu.memory_space<vmem>>, %arg9: memref<32x1xbf16, #tpu.memory_space<vmem>>, %arg10: memref<128x1xf32, #tpu.memory_space<vmem>>) attributes {dimension_semantics = [#tpu.dimension_semantics<parallel>], iteration_bounds = array<i64: 1>, scalar_prefetch = 0 : i64, scratch_operands = 0 : i64, tpu.core_type = #tpu.core_type<tc>, window_params = [{transform_indices = @transform_0, window_bounds = array<i64: 128, 160>}, {pipeline_mode = #tpu.pipeline_mode<synchronous>, transform_indices = @transform_1, window_bounds = array<i64: 160, 128>}, {pipeline_mode = #tpu.pipeline_mode<synchronous>, transform_indices = @transform_2, window_bounds = array<i64: 1, 128>}, {pipeline_mode = #tpu.pipeline_mode<synchronous>, transform_indices = @transform_3, window_bounds = array<i64: 128, 64>}, {pipeline_mode = #tpu.pipeline_mode<synchronous>, transform_indices = @transform_4, window_bounds = array<i64: 1, 64>}, {pipeline_mode = #tpu.pipeline_mode<synchronous>, transform_indices = @transform_5, window_bounds = array<i64: 64, 32>}, {pipeline_mode = #tpu.pipeline_mode<synchronous>, transform_indices = @transform_6, window_bounds = array<i64: 1, 32>}, {pipeline_mode = #tpu.pipeline_mode<synchronous>, transform_indices = @transform_7, window_bounds = array<i64: 160, 1>}, {pipeline_mode = #tpu.pipeline_mode<synchronous>, transform_indices = @transform_8, window_bounds = array<i64: 32, 1>}, {transform_indices = @transform_9, window_bounds = array<i64: 128, 1>}]} {
    %c0 = arith.constant 0 : index
    %c0_0 = arith.constant 0 : index
    %0 = vector.load %arg1[%c0, %c0_0] : memref<128x160xbf16, #tpu.memory_space<vmem>>, vector<128x160xbf16>
    %c0_1 = arith.constant 0 : index
    %c0_2 = arith.constant 0 : index
    %1 = vector.load %arg8[%c0_1, %c0_2] : memref<160x1xbf16, #tpu.memory_space<vmem>>, vector<160x1xbf16>
    %cst = arith.constant dense<0.000000e+00> : vector<128x1xf32>
    %2 = tpu.matmul %0, %1, %cst {dimension_numbers = #tpu.dot_dimension_numbers<[1], [0], [0], [1], [0, 0, 1, 1], [], []>} : vector<128x160xbf16>, vector<160x1xbf16>, vector<128x1xf32> -> vector<128x1xf32>
    %c0_3 = arith.constant 0 : index
    %c0_4 = arith.constant 0 : index
    %3 = vector.load %arg2[%c0_3, %c0_4] : memref<160x128xbf16, #tpu.memory_space<vmem>>, vector<160x128xbf16>
    %cst_5 = arith.constant dense<0.000000e+00> : vector<128x128xf32>
    %4 = tpu.matmul %0, %3, %cst_5 {dimension_numbers = #tpu.dot_dimension_numbers<[1], [0], [0], [1], [0, 0, 1, 1], [], []>} : vector<128x160xbf16>, vector<160x128xbf16>, vector<128x128xf32> -> vector<128x128xf32>
    %c0_6 = arith.constant 0 : index
    %c0_7 = arith.constant 0 : index
    %5 = vector.load %arg3[%c0_6, %c0_7] : memref<1x128xf32, #tpu.memory_space<vmem>>, vector<1x128xf32>
    %6 = vector.broadcast %5 : vector<1x128xf32> to vector<128x128xf32>
    %7 = arith.addf %4, %6 : vector<128x128xf32>
    %cst_8 = arith.constant 0.000000e+00 : f32
    %8 = vector.broadcast %cst_8 : f32 to vector<128x128xf32>
    %9 = arith.maximumf %7, %8 : vector<128x128xf32>
    %10 = arith.truncf %9 : vector<128x128xf32> to vector<128x128xbf16>
    %c0_9 = arith.constant 0 : index
    %c0_10 = arith.constant 0 : index
    %11 = vector.load %arg4[%c0_9, %c0_10] : memref<128x64xbf16, #tpu.memory_space<vmem>>, vector<128x64xbf16>
    %cst_11 = arith.constant dense<0.000000e+00> : vector<128x64xf32>
    %12 = tpu.matmul %10, %11, %cst_11 {dimension_numbers = #tpu.dot_dimension_numbers<[1], [0], [0], [1], [0, 0, 1, 1], [], []>} : vector<128x128xbf16>, vector<128x64xbf16>, vector<128x64xf32> -> vector<128x64xf32>
    %c0_12 = arith.constant 0 : index
    %c0_13 = arith.constant 0 : index
    %13 = vector.load %arg5[%c0_12, %c0_13] : memref<1x64xf32, #tpu.memory_space<vmem>>, vector<1x64xf32>
    %14 = vector.broadcast %13 : vector<1x64xf32> to vector<128x64xf32>
    %15 = arith.addf %12, %14 : vector<128x64xf32>
    %cst_14 = arith.constant 0.000000e+00 : f32
    %16 = vector.broadcast %cst_14 : f32 to vector<128x64xf32>
    %17 = arith.maximumf %15, %16 : vector<128x64xf32>
    %18 = arith.truncf %17 : vector<128x64xf32> to vector<128x64xbf16>
    %c0_15 = arith.constant 0 : index
    %c0_16 = arith.constant 0 : index
    %19 = vector.load %arg6[%c0_15, %c0_16] : memref<64x32xbf16, #tpu.memory_space<vmem>>, vector<64x32xbf16>
    %cst_17 = arith.constant dense<0.000000e+00> : vector<128x32xf32>
    %20 = tpu.matmul %18, %19, %cst_17 {dimension_numbers = #tpu.dot_dimension_numbers<[1], [0], [0], [1], [0, 0, 1, 1], [], []>} : vector<128x64xbf16>, vector<64x32xbf16>, vector<128x32xf32> -> vector<128x32xf32>
    %c0_18 = arith.constant 0 : index
    %c0_19 = arith.constant 0 : index
    %21 = vector.load %arg7[%c0_18, %c0_19] : memref<1x32xf32, #tpu.memory_space<vmem>>, vector<1x32xf32>
    %22 = vector.broadcast %21 : vector<1x32xf32> to vector<128x32xf32>
    %23 = arith.addf %20, %22 : vector<128x32xf32>
    %cst_20 = arith.constant 0.000000e+00 : f32
    %24 = vector.broadcast %cst_20 : f32 to vector<128x32xf32>
    %25 = arith.maximumf %23, %24 : vector<128x32xf32>
    %26 = arith.truncf %25 : vector<128x32xf32> to vector<128x32xbf16>
    %c0_21 = arith.constant 0 : index
    %c0_22 = arith.constant 0 : index
    %27 = vector.load %arg9[%c0_21, %c0_22] : memref<32x1xbf16, #tpu.memory_space<vmem>>, vector<32x1xbf16>
    %cst_23 = arith.constant dense<0.000000e+00> : vector<128x1xf32>
    %28 = tpu.matmul %26, %27, %cst_23 {dimension_numbers = #tpu.dot_dimension_numbers<[1], [0], [0], [1], [0, 0, 1, 1], [], []>} : vector<128x32xbf16>, vector<32x1xbf16>, vector<128x1xf32> -> vector<128x1xf32>
    %29 = arith.addf %2, %28 : vector<128x1xf32>
    %30 = arith.negf %29 : vector<128x1xf32>
    %31 = math.exp %30 : vector<128x1xf32>
    %cst_24 = arith.constant 1.000000e+00 : f32
    %32 = vector.broadcast %cst_24 : f32 to vector<128x1xf32>
    %33 = arith.addf %32, %31 : vector<128x1xf32>
    %34 = arith.divf %32, %33 : vector<128x1xf32>
    %c0_25 = arith.constant 0 : index
    %c0_26 = arith.constant 0 : index
    %35 = vector.load %arg10[%c0_25, %c0_26] : memref<128x1xf32, #tpu.memory_space<vmem>>, vector<128x1xf32>
    tpu.vector_store %arg10[%c0_25, %c0_26], %34 {strides = array<i32>} : memref<128x1xf32, #tpu.memory_space<vmem>>, vector<128x1xf32>,
    return
  }
  func.func @transform_0(%arg0: i32) -> (i32, i32) {
    %c0_i32 = arith.constant 0 : i32
    %c0_i32_0 = arith.constant 0 : i32
    return %arg0, %c0_i32 : i32, i32
  }
  func.func @transform_1(%arg0: i32) -> (i32, i32) {
    %c0_i32 = arith.constant 0 : i32
    %c0_i32_0 = arith.constant 0 : i32
    %c0_i32_1 = arith.constant 0 : i32
    return %c0_i32, %c0_i32_0 : i32, i32
  }
  func.func @transform_2(%arg0: i32) -> (i32, i32) {
    %c0_i32 = arith.constant 0 : i32
    %c0_i32_0 = arith.constant 0 : i32
    %c0_i32_1 = arith.constant 0 : i32
    return %c0_i32, %c0_i32_0 : i32, i32
  }
  func.func @transform_3(%arg0: i32) -> (i32, i32) {
    %c0_i32 = arith.constant 0 : i32
    %c0_i32_0 = arith.constant 0 : i32
    %c0_i32_1 = arith.constant 0 : i32
    return %c0_i32, %c0_i32_0 : i32, i32
  }
  func.func @transform_4(%arg0: i32) -> (i32, i32) {
    %c0_i32 = arith.constant 0 : i32
    %c0_i32_0 = arith.constant 0 : i32
    %c0_i32_1 = arith.constant 0 : i32
    return %c0_i32, %c0_i32_0 : i32, i32
  }
  func.func @transform_5(%arg0: i32) -> (i32, i32) {
    %c0_i32 = arith.constant 0 : i32
    %c0_i32_0 = arith.constant 0 : i32
    %c0_i32_1 = arith.constant 0 : i32
    return %c0_i32, %c0_i32_0 : i32, i32
  }
  func.func @transform_6(%arg0: i32) -> (i32, i32) {
    %c0_i32 = arith.constant 0 : i32
    %c0_i32_0 = arith.constant 0 : i32
    %c0_i32_1 = arith.constant 0 : i32
    return %c0_i32, %c0_i32_0 : i32, i32
  }
  func.func @transform_7(%arg0: i32) -> (i32, i32) {
    %c0_i32 = arith.constant 0 : i32
    %c0_i32_0 = arith.constant 0 : i32
    %c0_i32_1 = arith.constant 0 : i32
    return %c0_i32, %c0_i32_0 : i32, i32
  }
  func.func @transform_8(%arg0: i32) -> (i32, i32) {
    %c0_i32 = arith.constant 0 : i32
    %c0_i32_0 = arith.constant 0 : i32
    %c0_i32_1 = arith.constant 0 : i32
    return %c0_i32, %c0_i32_0 : i32, i32
  }
  func.func @transform_9(%arg0: i32) -> (i32, i32) {
    %c0_i32 = arith.constant 0 : i32
    %c0_i32_0 = arith.constant 0 : i32
    return %arg0, %c0_i32 : i32, i32
  }
}

</mosaic_0001>

<llo_original>
// kernel: tpu_custom_call.1
$region0: #{tpu_custom_call.1}
  #allocation0 [shape = 'u32[]', space=smem, size = 0x4, offset = 0x4, fixed_abs, tag = 'smem constant byte address 0x4 - core index']
  #allocation1 [shape = 'u32[144,128]{1,0:T(1,128)}', space=vmem, size = 0x12000, scoped, tag = 'internal scratch']
  %s0 = inlined_call_operand.vmem [shape: bf16[128,160], index: 0, kind: input, shape index: {}]
  %s1 = inlined_call_operand.vmem [shape: bf16[160,128], index: 1, kind: input, shape index: {}]
  %s2 = inlined_call_operand.vmem [shape: f32[1,128], index: 2, kind: input, shape index: {}]
  %s3 = inlined_call_operand.vmem [shape: bf16[128,64], index: 3, kind: input, shape index: {}]
  %s4 = inlined_call_operand.vmem [shape: f32[1,64], index: 4, kind: input, shape index: {}]
  %s5 = inlined_call_operand.vmem [shape: bf16[64,32], index: 5, kind: input, shape index: {}]
  %s6 = inlined_call_operand.vmem [shape: f32[1,32], index: 6, kind: input, shape index: {}]
  %s7 = inlined_call_operand.vmem [shape: bf16[160,1], index: 7, kind: input, shape index: {}]
  %s8 = inlined_call_operand.vmem [shape: bf16[32,1], index: 8, kind: input, shape index: {}]
  %s9 = inlined_call_operand.vmem [shape: f32[128,1], index: 9, kind: output, shape index: {}]
  %s10 = sld [smem:[#allocation0]]
  $region46: #{tpu_custom_call.1} parent=0
    _
  %s12 = ssub.s32 1, %s10
  %s13 = scalar_select 0, %s12, %s10
  // Predicated region
  $region2: #{tpu_custom_call.1} parent=0 // pred_check
    _
  $region3: #{tpu_custom_call.1} parent=0 // pred_check_branch
    %15 = sbr.rel (0) target = $region5
  $region4: #{tpu_custom_call.1} parent=0 // pred_region
    _
  $region5: #{tpu_custom_call.1} parent=0 // pred_fallthru
    _
  // Predicated region
  $region6: #{tpu_custom_call.1} parent=0 // pred_check
    _
  $region7: #{tpu_custom_call.1} parent=0 // pred_check_branch
    %17 = sbr.rel (0) target = $region9
  $region8: #{tpu_custom_call.1} parent=0 // pred_region
    _
  $region9: #{tpu_custom_call.1} parent=0 // pred_fallthru
    _
  // Predicated region
  $region10: #{tpu_custom_call.1} parent=0 // pred_check
    _
  $region11: #{tpu_custom_call.1} parent=0 // pred_check_branch
    %19 = sbr.rel (0) target = $region13
  $region12: #{tpu_custom_call.1} parent=0 // pred_region
    _
  $region13: #{tpu_custom_call.1} parent=0 // pred_fallthru
    _
  // Predicated region
  $region14: #{tpu_custom_call.1} parent=0 // pred_check
    _
  $region15: #{tpu_custom_call.1} parent=0 // pred_check_branch
    %21 = sbr.rel (0) target = $region17
  $region16: #{tpu_custom_call.1} parent=0 // pred_region
    _
  $region17: #{tpu_custom_call.1} parent=0 // pred_fallthru
    _
  // Predicated region
  $region18: #{tpu_custom_call.1} parent=0 // pred_check
    _
  $region19: #{tpu_custom_call.1} parent=0 // pred_check_branch
    %23 = sbr.rel (0) target = $region21
  $region20: #{tpu_custom_call.1} parent=0 // pred_region
    _
  $region21: #{tpu_custom_call.1} parent=0 // pred_fallthru
    _
  // Predicated region
  $region22: #{tpu_custom_call.1} parent=0 // pred_check
    _
  $region23: #{tpu_custom_call.1} parent=0 // pred_check_branch
    %25 = sbr.rel (0) target = $region25
  $region24: #{tpu_custom_call.1} parent=0 // pred_region
    _
  $region25: #{tpu_custom_call.1} parent=0 // pred_fallthru
    _
  // Predicated region
  $region26: #{tpu_custom_call.1} parent=0 // pred_check
    _
  $region27: #{tpu_custom_call.1} parent=0 // pred_check_branch
    %27 = sbr.rel (0) target = $region29
  $region28: #{tpu_custom_call.1} parent=0 // pred_region
    _
  $region29: #{tpu_custom_call.1} parent=0 // pred_fallthru
    _
  // Predicated region
  $region30: #{tpu_custom_call.1} parent=0 // pred_check
    _
  $region31: #{tpu_custom_call.1} parent=0 // pred_check_branch
    %29 = sbr.rel (0) target = $region33
  $region32: #{tpu_custom_call.1} parent=0 // pred_region
    _
  $region33: #{tpu_custom_call.1} parent=0 // pred_fallthru
    _
  // Predicated region
  $region34: #{tpu_custom_call.1} parent=0 // pred_check
    _
  $region35: #{tpu_custom_call.1} parent=0 // pred_check_branch
    %31 = sbr.rel (0) target = $region37
  $region36: #{tpu_custom_call.1} parent=0 // pred_region
    _
  $region37: #{tpu_custom_call.1} parent=0 // pred_fallthru
    _
  %v33 = vld [vmem:[%s0] sm:$0xff]
  %v34 = vld [vmem:[%s0 + $0x8] sm:$0xff]
  %v35 = vld [vmem:[%s0 + $0x10] sm:$0xff]
  %v36 = vld [vmem:[%s0 + $0x18] sm:$0xff]
  %v37 = vld [vmem:[%s0 + $0x20] sm:$0xff]
  %v38 = vld [vmem:[%s0 + $0x28] sm:$0xff]
  %v39 = vld [vmem:[%s0 + $0x30] sm:$0xff]
  %v40 = vld [vmem:[%s0 + $0x38] sm:$0xff]
  %v41 = vld [vmem:[%s0 + $0x40] sm:$0xff]
  %v42 = vld [vmem:[%s0 + $0x48] sm:$0xff]
  %v43 = vld [vmem:[%s0 + $0x50] sm:$0xff]
  %v44 = vld [vmem:[%s0 + $0x58] sm:$0xff]
  %v45 = vld [vmem:[%s0 + $0x60] sm:$0xff]
  %v46 = vld [vmem:[%s0 + $0x68] sm:$0xff]
  %v47 = vld [vmem:[%s0 + $0x70] sm:$0xff]
  %v48 = vld [vmem:[%s0 + $0x78] sm:$0xff]
  %v49 = vld [vmem:[%s7] sm:$0xf]
  %v50 = vld [vmem:[%s7 + $0x4] sm:$0xf]
  %v51 = vld [vmem:[%s7 + $0x8] sm:$0xf]
  %v52 = vld [vmem:[%s7 + $0xc] sm:$0xf]
  %v53 = vld [vmem:[%s7 + $0x10] sm:$0xf]
  %v54 = vld [vmem:[%s7 + $0x14] sm:$0xf]
  %v55 = vld [vmem:[%s7 + $0x18] sm:$0xf]
  %v56 = vld [vmem:[%s7 + $0x1c] sm:$0xf]
  %v57 = vld [vmem:[%s7 + $0x20] sm:$0xf]
  %v58 = vld [vmem:[%s7 + $0x24] sm:$0xf]
  %v59 = vld [vmem:[%s7 + $0x28] sm:$0xf]
  %v60 = vld [vmem:[%s7 + $0x2c] sm:$0xf]
  %v61 = vld [vmem:[%s7 + $0x30] sm:$0xf]
  %v62 = vld [vmem:[%s7 + $0x34] sm:$0xf]
  %v63 = vld [vmem:[%s7 + $0x38] sm:$0xf]
  %v64 = vld [vmem:[%s7 + $0x3c] sm:$0xf]
  %v65 = vld [vmem:[%s7 + $0x40] sm:$0xf]
  %v66 = vld [vmem:[%s7 + $0x44] sm:$0xf]
  %v67 = vld [vmem:[%s7 + $0x48] sm:$0xf]
  %v68 = vld [vmem:[%s7 + $0x4c] sm:$0xf]
  %v69 = vld [vmem:[%s1] sm:$0xf]
  %v70 = vld [vmem:[%s1 + $0x4] sm:$0xf]
  %v71 = vld [vmem:[%s1 + $0x8] sm:$0xf]
  %v72 = vld [vmem:[%s1 + $0xc] sm:$0xf]
  %v73 = vld [vmem:[%s1 + $0x10] sm:$0xf]
  %v74 = vld [vmem:[%s1 + $0x14] sm:$0xf]
  %v75 = vld [vmem:[%s1 + $0x18] sm:$0xf]
  %v76 = vld [vmem:[%s1 + $0x1c] sm:$0xf]
  %v77 = vld [vmem:[%s1 + $0x20] sm:$0xf]
  %v78 = vld [vmem:[%s1 + $0x24] sm:$0xf]
  %v79 = vld [vmem:[%s1 + $0x28] sm:$0xf]
  %v80 = vld [vmem:[%s1 + $0x2c] sm:$0xf]
  %v81 = vld [vmem:[%s1 + $0x30] sm:$0xf]
  %v82 = vld [vmem:[%s1 + $0x34] sm:$0xf]
  %v83 = vld [vmem:[%s1 + $0x38] sm:$0xf]
  %v84 = vld [vmem:[%s1 + $0x3c] sm:$0xf]
  %v85 = vld [vmem:[%s1 + $0x40] sm:$0xf]
  %v86 = vld [vmem:[%s1 + $0x44] sm:$0xf]
  %v87 = vld [vmem:[%s1 + $0x48] sm:$0xf]
  %v88 = vld [vmem:[%s1 + $0x4c] sm:$0xf]
  %v89 = vld [vmem:[%s2] sm:$0x1]
  %v91 = vlaneseq
  %v92 = vshrl.u32 %v91, 7
  %v93 = vsub.s32 0, %v92
  %v94 = vrot.slane %v89, %v93
  %v112 = vunpack.c.l.b16 %v33
  %v113 = vunpack.c.h.b16 %v33
  %v114 = vunpack.c.l.b16 %v34
  %v115 = vunpack.c.h.b16 %v34
  %v116 = vunpack.c.l.b16 %v35
  %v117 = vunpack.c.h.b16 %v35
  %v118 = vunpack.c.l.b16 %v36
  %v119 = vunpack.c.h.b16 %v36
  %v120 = vunpack.c.l.b16 %v37
  %v121 = vunpack.c.h.b16 %v37
  %v122 = vunpack.c.l.b16 %v38
  %v123 = vunpack.c.h.b16 %v38
  %v124 = vunpack.c.l.b16 %v39
  %v125 = vunpack.c.h.b16 %v39
  %v126 = vunpack.c.l.b16 %v40
  %v127 = vunpack.c.h.b16 %v40
  %v128 = vunpack.c.l.b16 %v41
  %v129 = vunpack.c.h.b16 %v41
  %v130 = vunpack.c.l.b16 %v42
  %v131 = vunpack.c.h.b16 %v42
  %v132 = vunpack.c.l.b16 %v43
  %v133 = vunpack.c.h.b16 %v43
  %v134 = vunpack.c.l.b16 %v44
  %v135 = vunpack.c.h.b16 %v44
  %v136 = vunpack.c.l.b16 %v45
  %v137 = vunpack.c.h.b16 %v45
  %v138 = vunpack.c.l.b16 %v46
  %v139 = vunpack.c.h.b16 %v46
  %v140 = vunpack.c.l.b16 %v47
  %v141 = vunpack.c.h.b16 %v47
  %v142 = vunpack.c.l.b16 %v48
  %v143 = vunpack.c.h.b16 %v48
  %v144 = vpack.c.b16 %v114, %v112
  %v145 = vpack.c.b16 %v115, %v113
  %v146 = vpack.c.b16 %v118, %v116
  %v147 = vpack.c.b16 %v119, %v117
  %v148 = vpack.c.b16 %v122, %v120
  %v149 = vpack.c.b16 %v123, %v121
  %v150 = vpack.c.b16 %v126, %v124
  %v151 = vpack.c.b16 %v127, %v125
  %v152 = vpack.c.b16 %v130, %v128
  %v153 = vpack.c.b16 %v131, %v129
  %v154 = vpack.c.b16 %v134, %v132
  %v155 = vpack.c.b16 %v135, %v133
  %v156 = vpack.c.b16 %v138, %v136
  %v157 = vpack.c.b16 %v139, %v137
  %v158 = vpack.c.b16 %v142, %v140
  %v159 = vpack.c.b16 %v143, %v141
  %v188 = vunpack.c.l.b16 %v69
  %v189 = vunpack.c.l.b16 %v70
  %v190 = vunpack.c.l.b16 %v71
  %v191 = vunpack.c.l.b16 %v72
  %v192 = vunpack.c.l.b16 %v73
  %v193 = vunpack.c.l.b16 %v74
  %v194 = vunpack.c.l.b16 %v75
  %v195 = vunpack.c.l.b16 %v76
  %v196 = vunpack.c.l.b16 %v77
  %v197 = vunpack.c.l.b16 %v78
  %v198 = vunpack.c.l.b16 %v79
  %v199 = vunpack.c.l.b16 %v80
  %v200 = vunpack.c.l.b16 %v81
  %v201 = vunpack.c.l.b16 %v82
  %v202 = vunpack.c.l.b16 %v83
  %v203 = vunpack.c.l.b16 %v84
  %v204 = vunpack.c.l.b16 %v85
  %v205 = vunpack.c.l.b16 %v86
  %v206 = vunpack.c.l.b16 %v87
  %v207 = vunpack.c.l.b16 %v88
  %v208 = vpack.c.b16 %v189, %v188
  %v209 = vpack.c.b16 %v191, %v190
  %v210 = vpack.c.b16 %v193, %v192
  %v211 = vpack.c.b16 %v195, %v194
  %v212 = vpack.c.b16 %v197, %v196
  %v213 = vpack.c.b16 %v199, %v198
  %v214 = vpack.c.b16 %v201, %v200
  %v215 = vpack.c.b16 %v203, %v202
  %v216 = vpack.c.b16 %v205, %v204
  %v217 = vpack.c.b16 %v207, %v206
  %vm228 = vcmask 261120
  %v230 = vsel %vm228, %v145, 0
  %v233 = vsel %vm228, %v147, 0
  %v236 = vsel %vm228, %v149, 0
  %v239 = vsel %vm228, %v151, 0
  %v242 = vsel %vm228, %v153, 0
  %v245 = vsel %vm228, %v155, 0
  %v248 = vsel %vm228, %v157, 0
  %v251 = vsel %vm228, %v159, 0
  %253 = vmatprep.subr.bf16.mxu0 0
  %254 = vmatpush1.bf16.msra.mxu0 %v215
  %255 = vmatprep.subr.bf16.mxu0 0
  %256 = vmatpush1.bf16.msra.mxu0 %v214
  %257 = vmatprep.subr.bf16.mxu0 0
  %258 = vmatpush1.bf16.msra.mxu0 %v213
  %259 = vmatprep.subr.bf16.mxu0 0
  %260 = vmatpush1.bf16.msra.mxu0 %v212
  %261 = vmatprep.subr.bf16.mxu0 0
  %262 = vmatpush1.bf16.msra.mxu0 %v211
  %263 = vmatprep.subr.bf16.mxu0 0
  %264 = vmatpush1.bf16.msra.mxu0 %v210
  %265 = vmatprep.subr.bf16.mxu0 0
  %266 = vmatpush1.bf16.msra.mxu0 %v209
  %267 = vmatprep.subr.bf16.mxu0 0
  %268 = vmatpush1.bf16.msra.mxu0 %v208
  %269 = vmatprep.subr.bf16.mxu0 0
  %270 = vmatpush2.bf16.msra.mxu0 0
  %271 = vmatprep.subr.bf16.mxu0 0
  %272 = vmatpush2.bf16.msra.mxu0 0
  %273 = vmatprep.subr.bf16.mxu0 0
  %274 = vmatpush2.bf16.msra.mxu0 0
  %275 = vmatprep.subr.bf16.mxu0 0
  %276 = vmatpush2.bf16.msra.mxu0 0
  %277 = vmatprep.subr.bf16.mxu0 0
  %278 = vmatpush2.bf16.msra.mxu0 0
  %279 = vmatprep.subr.bf16.mxu0 0
  %280 = vmatpush2.bf16.msra.mxu0 0
  %281 = vmatprep.subr.bf16.mxu0 0
  %282 = vmatpush2.bf16.msra.mxu0 %v217
  %283 = vmatprep.subr.bf16.mxu0 0
  %284 = vmatpush2.bf16.msra.mxu0 %v216
  %285 = vmatprep.mubr.bf16.mxu0 %v230
  %286 = vmatmul.mubr.bf16.gmra.mxu0 %v144
  %v287 = vpop.f32.mrf.mxu0
  %v288 = vadd.f32 %v94, %v287
  %v289 = vpop.f32.mrf.mxu0
  %v290 = vpop.f32.mrf.mxu0
  %v291 = vadd.f32 %v94, %v290
  %v292 = vpop.f32.mrf.mxu0
  %293 = vmatprep.mubr.bf16.mxu0 %v233
  %294 = vmatmul.mubr.bf16.gmra.mxu0 %v146
  %v295 = vpop.f32.mrf.mxu0
  %v296 = vadd.f32 %v94, %v295
  %v297 = vpop.f32.mrf.mxu0
  %v298 = vpop.f32.mrf.mxu0
  %v299 = vadd.f32 %v94, %v298
  %v300 = vpop.f32.mrf.mxu0
  %301 = vmatprep.mubr.bf16.mxu0 %v236
  %302 = vmatmul.mubr.bf16.gmra.mxu0 %v148
  %v303 = vpop.f32.mrf.mxu0
  %v304 = vadd.f32 %v94, %v303
  %v305 = vpop.f32.mrf.mxu0
  %v306 = vpop.f32.mrf.mxu0
  %v307 = vadd.f32 %v94, %v306
  %v308 = vpop.f32.mrf.mxu0
  %309 = vmatprep.mubr.bf16.mxu0 %v239
  %310 = vmatmul.mubr.bf16.gmra.mxu0 %v150
  %v311 = vpop.f32.mrf.mxu0
  %v312 = vadd.f32 %v94, %v311
  %v313 = vpop.f32.mrf.mxu0
  %v314 = vpop.f32.mrf.mxu0
  %v315 = vadd.f32 %v94, %v314
  %v316 = vpop.f32.mrf.mxu0
  %317 = vmatprep.mubr.bf16.mxu0 %v242
  %318 = vmatmul.mubr.bf16.gmra.mxu0 %v152
  %v319 = vpop.f32.mrf.mxu0
  %v320 = vadd.f32 %v94, %v319
  %v321 = vpop.f32.mrf.mxu0
  %v322 = vpop.f32.mrf.mxu0
  %v323 = vadd.f32 %v94, %v322
  %v324 = vpop.f32.mrf.mxu0
  %325 = vmatprep.mubr.bf16.mxu0 %v245
  %326 = vmatmul.mubr.bf16.gmra.mxu0 %v154
  %v327 = vpop.f32.mrf.mxu0
  %v328 = vadd.f32 %v94, %v327
  %v329 = vpop.f32.mrf.mxu0
  %v330 = vpop.f32.mrf.mxu0
  %v331 = vadd.f32 %v94, %v330
  %v332 = vpop.f32.mrf.mxu0
  %333 = vmatprep.mubr.bf16.mxu0 %v248
  %334 = vmatmul.mubr.bf16.gmra.mxu0 %v156
  %v335 = vpop.f32.mrf.mxu0
  %v336 = vadd.f32 %v94, %v335
  %v337 = vpop.f32.mrf.mxu0
  %v338 = vpop.f32.mrf.mxu0
  %v339 = vadd.f32 %v94, %v338
  %v340 = vpop.f32.mrf.mxu0
  %341 = vmatprep.mubr.bf16.mxu0 %v251
  %342 = vmatmul.mubr.bf16.gmra.mxu0 %v158
  %v343 = vpop.f32.mrf.mxu0
  %v344 = vadd.f32 %v94, %v343
  %v345 = vpop.f32.mrf.mxu0
  %v346 = vpop.f32.mrf.mxu0
  %v347 = vadd.f32 %v94, %v346
  %v348 = vpop.f32.mrf.mxu0
  %349 = vdwg.mxu0
  %v350 = vmax.f32 %v288, 0.0
  %v351 = vmax.f32 %v291, 0.0
  %v352 = vmax.f32 %v296, 0.0
  %v353 = vmax.f32 %v299, 0.0
  %v354 = vmax.f32 %v304, 0.0
  %v355 = vmax.f32 %v307, 0.0
  %v356 = vmax.f32 %v312, 0.0
  %v357 = vmax.f32 %v315, 0.0
  %v358 = vmax.f32 %v320, 0.0
  %v359 = vmax.f32 %v323, 0.0
  %v360 = vmax.f32 %v328, 0.0
  %v361 = vmax.f32 %v331, 0.0
  %v362 = vmax.f32 %v336, 0.0
  %v363 = vmax.f32 %v339, 0.0
  %v364 = vmax.f32 %v344, 0.0
  %v365 = vmax.f32 %v347, 0.0
  %v366 = vpack.c.bf16 %v351, %v350
  %v367 = vpack.c.bf16 %v353, %v352
  %v368 = vpack.c.bf16 %v355, %v354
  %v369 = vpack.c.bf16 %v357, %v356
  %v370 = vpack.c.bf16 %v359, %v358
  %v371 = vpack.c.bf16 %v361, %v360
  %v372 = vpack.c.bf16 %v363, %v362
  %v373 = vpack.c.bf16 %v365, %v364
  %v374 = vld [vmem:[%s3] sm:$0xf]
  %v375 = vld [vmem:[%s3 + $0x4] sm:$0xf]
  %v376 = vld [vmem:[%s3 + $0x8] sm:$0xf]
  %v377 = vld [vmem:[%s3 + $0xc] sm:$0xf]
  %v378 = vld [vmem:[%s3 + $0x10] sm:$0xf]
  %v379 = vld [vmem:[%s3 + $0x14] sm:$0xf]
  %v380 = vld [vmem:[%s3 + $0x18] sm:$0xf]
  %v381 = vld [vmem:[%s3 + $0x1c] sm:$0xf]
  %v382 = vld [vmem:[%s3 + $0x20] sm:$0xf]
  %v383 = vld [vmem:[%s3 + $0x24] sm:$0xf]
  %v384 = vld [vmem:[%s3 + $0x28] sm:$0xf]
  %v385 = vld [vmem:[%s3 + $0x2c] sm:$0xf]
  %v386 = vld [vmem:[%s3 + $0x30] sm:$0xf]
  %v387 = vld [vmem:[%s3 + $0x34] sm:$0xf]
  %v388 = vld [vmem:[%s3 + $0x38] sm:$0xf]
  %v389 = vld [vmem:[%s3 + $0x3c] sm:$0xf]
  %v390 = vld [vmem:[%s4] sm:$0x1]
  %v392 = vlaneseq
  %v393 = vshrl.u32 %v392, 7
  %v394 = vsub.s32 0, %v393
  %v395 = vrot.slane %v390, %v394
  %v413 = vunpack.c.l.b16 %v374
  %v414 = vunpack.c.l.b16 %v375
  %v415 = vunpack.c.l.b16 %v376
  %v416 = vunpack.c.l.b16 %v377
  %v417 = vunpack.c.l.b16 %v378
  %v418 = vunpack.c.l.b16 %v379
  %v419 = vunpack.c.l.b16 %v380
  %v420 = vunpack.c.l.b16 %v381
  %v421 = vunpack.c.l.b16 %v382
  %v422 = vunpack.c.l.b16 %v383
  %v423 = vunpack.c.l.b16 %v384
  %v424 = vunpack.c.l.b16 %v385
  %v425 = vunpack.c.l.b16 %v386
  %v426 = vunpack.c.l.b16 %v387
  %v427 = vunpack.c.l.b16 %v388
  %v428 = vunpack.c.l.b16 %v389
  %v429 = vpack.c.b16 %v414, %v413
  %v430 = vpack.c.b16 %v416, %v415
  %v431 = vpack.c.b16 %v418, %v417
  %v432 = vpack.c.b16 %v420, %v419
  %v433 = vpack.c.b16 %v422, %v421
  %v434 = vpack.c.b16 %v424, %v423
  %v435 = vpack.c.b16 %v426, %v425
  %v436 = vpack.c.b16 %v428, %v427
  %445 = vmatprep.subr.bf16.mxu0 0
  %446 = vmatpush1.bf16.msra.mxu0 %v436
  %447 = vmatprep.subr.bf16.mxu0 0
  %448 = vmatpush1.bf16.msra.mxu0 %v435
  %449 = vmatprep.subr.bf16.mxu0 0
  %450 = vmatpush1.bf16.msra.mxu0 %v434
  %451 = vmatprep.subr.bf16.mxu0 0
  %452 = vmatpush1.bf16.msra.mxu0 %v433
  %453 = vmatprep.subr.bf16.mxu0 0
  %454 = vmatpush1.bf16.msra.mxu0 %v432
  %455 = vmatprep.subr.bf16.mxu0 0
  %456 = vmatpush1.bf16.msra.mxu0 %v431
  %457 = vmatprep.subr.bf16.mxu0 0
  %458 = vmatpush1.bf16.msra.mxu0 %v430
  %459 = vmatprep.subr.bf16.mxu0 0
  %460 = vmatpush1.bf16.msra.mxu0 %v429
  %461 = vmatprep.subr.bf16.mxu0 0
  %462 = vmatpush2.bf16.msra.mxu0 0
  %463 = vmatprep.subr.bf16.mxu0 0
  %464 = vmatpush2.bf16.msra.mxu0 0
  %465 = vmatprep.subr.bf16.mxu0 0
  %466 = vmatpush2.bf16.msra.mxu0 0
  %467 = vmatprep.subr.bf16.mxu0 0
  %468 = vmatpush2.bf16.msra.mxu0 0
  %469 = vmatprep.subr.bf16.mxu0 0
  %470 = vmatpush2.bf16.msra.mxu0 0
  %471 = vmatprep.subr.bf16.mxu0 0
  %472 = vmatpush2.bf16.msra.mxu0 0
  %473 = vmatprep.subr.bf16.mxu0 0
  %474 = vmatpush2.bf16.msra.mxu0 0
  %475 = vmatprep.subr.bf16.mxu0 0
  %476 = vmatpush2.bf16.msra.mxu0 0
  %477 = vmatprep.mubr.bf16.mxu0 0
  %478 = vmatmul.mubr.bf16.gmra.mxu0 %v366
  %v479 = vpop.f32.mrf.mxu0
  %v480 = vadd.f32 %v395, %v479
  %v481 = vpop.f32.mrf.mxu0
  %v482 = vpop.f32.mrf.mxu0
  %v483 = vadd.f32 %v395, %v482
  %v484 = vpop.f32.mrf.mxu0
  %485 = vmatprep.mubr.bf16.mxu0 0
  %486 = vmatmul.mubr.bf16.gmra.mxu0 %v367
  %v487 = vpop.f32.mrf.mxu0
  %v488 = vadd.f32 %v395, %v487
  %v489 = vpop.f32.mrf.mxu0
  %v490 = vpop.f32.mrf.mxu0
  %v491 = vadd.f32 %v395, %v490
  %v492 = vpop.f32.mrf.mxu0
  %493 = vmatprep.mubr.bf16.mxu0 0
  %494 = vmatmul.mubr.bf16.gmra.mxu0 %v368
  %v495 = vpop.f32.mrf.mxu0
  %v496 = vadd.f32 %v395, %v495
  %v497 = vpop.f32.mrf.mxu0
  %v498 = vpop.f32.mrf.mxu0
  %v499 = vadd.f32 %v395, %v498
  %v500 = vpop.f32.mrf.mxu0
  %501 = vmatprep.mubr.bf16.mxu0 0
  %502 = vmatmul.mubr.bf16.gmra.mxu0 %v369
  %v503 = vpop.f32.mrf.mxu0
  %v504 = vadd.f32 %v395, %v503
  %v505 = vpop.f32.mrf.mxu0
  %v506 = vpop.f32.mrf.mxu0
  %v507 = vadd.f32 %v395, %v506
  %v508 = vpop.f32.mrf.mxu0
  %509 = vmatprep.mubr.bf16.mxu0 0
  %510 = vmatmul.mubr.bf16.gmra.mxu0 %v370
  %v511 = vpop.f32.mrf.mxu0
  %v512 = vadd.f32 %v395, %v511
  %v513 = vpop.f32.mrf.mxu0
  %v514 = vpop.f32.mrf.mxu0
  %v515 = vadd.f32 %v395, %v514
  %v516 = vpop.f32.mrf.mxu0
  %517 = vmatprep.mubr.bf16.mxu0 0
  %518 = vmatmul.mubr.bf16.gmra.mxu0 %v371
  %v519 = vpop.f32.mrf.mxu0
  %v520 = vadd.f32 %v395, %v519
  %v521 = vpop.f32.mrf.mxu0
  %v522 = vpop.f32.mrf.mxu0
  %v523 = vadd.f32 %v395, %v522
  %v524 = vpop.f32.mrf.mxu0
  %525 = vmatprep.mubr.bf16.mxu0 0
  %526 = vmatmul.mubr.bf16.gmra.mxu0 %v372
  %v527 = vpop.f32.mrf.mxu0
  %v528 = vadd.f32 %v395, %v527
  %v529 = vpop.f32.mrf.mxu0
  %v530 = vpop.f32.mrf.mxu0
  %v531 = vadd.f32 %v395, %v530
  %v532 = vpop.f32.mrf.mxu0
  %533 = vmatprep.mubr.bf16.mxu0 0
  %534 = vmatmul.mubr.bf16.gmra.mxu0 %v373
  %v535 = vpop.f32.mrf.mxu0
  %v536 = vadd.f32 %v395, %v535
  %v537 = vpop.f32.mrf.mxu0
  %v538 = vpop.f32.mrf.mxu0
  %v539 = vadd.f32 %v395, %v538
  %v540 = vpop.f32.mrf.mxu0
  %541 = vdwg.mxu0
  %v542 = vmax.f32 %v480, 0.0
  %v543 = vmax.f32 %v483, 0.0
  %v544 = vmax.f32 %v488, 0.0
  %v545 = vmax.f32 %v491, 0.0
  %v546 = vmax.f32 %v496, 0.0
  %v547 = vmax.f32 %v499, 0.0
  %v548 = vmax.f32 %v504, 0.0
  %v549 = vmax.f32 %v507, 0.0
  %v550 = vmax.f32 %v512, 0.0
  %v551 = vmax.f32 %v515, 0.0
  %v552 = vmax.f32 %v520, 0.0
  %v553 = vmax.f32 %v523, 0.0
  %v554 = vmax.f32 %v528, 0.0
  %v555 = vmax.f32 %v531, 0.0
  %v556 = vmax.f32 %v536, 0.0
  %v557 = vmax.f32 %v539, 0.0
  %v558 = vpack.c.bf16 %v543, %v542
  %v559 = vpack.c.bf16 %v545, %v544
  %v560 = vpack.c.bf16 %v547, %v546
  %v561 = vpack.c.bf16 %v549, %v548
  %v562 = vpack.c.bf16 %v551, %v550
  %v563 = vpack.c.bf16 %v553, %v552
  %v564 = vpack.c.bf16 %v555, %v554
  %v565 = vpack.c.bf16 %v557, %v556
  %v566 = vld [vmem:[%s5] sm:$0xf]
  %v567 = vld [vmem:[%s5 + $0x4] sm:$0xf]
  %v568 = vld [vmem:[%s5 + $0x8] sm:$0xf]
  %v569 = vld [vmem:[%s5 + $0xc] sm:$0xf]
  %v570 = vld [vmem:[%s5 + $0x10] sm:$0xf]
  %v571 = vld [vmem:[%s5 + $0x14] sm:$0xf]
  %v572 = vld [vmem:[%s5 + $0x18] sm:$0xf]
  %v573 = vld [vmem:[%s5 + $0x1c] sm:$0xf]
  %v574 = vld [vmem:[%s6] sm:$0x1]
  %v576 = vlaneseq
  %v577 = vshrl.u32 %v576, 7
  %v578 = vsub.s32 0, %v577
  %v579 = vrot.slane %v574, %v578
  %v589 = vunpack.c.l.b16 %v566
  %v590 = vunpack.c.l.b16 %v567
  %v591 = vunpack.c.l.b16 %v568
  %v592 = vunpack.c.l.b16 %v569
  %v593 = vunpack.c.l.b16 %v570
  %v594 = vunpack.c.l.b16 %v571
  %v595 = vunpack.c.l.b16 %v572
  %v596 = vunpack.c.l.b16 %v573
  %v597 = vpack.c.b16 %v590, %v589
  %v598 = vpack.c.b16 %v592, %v591
  %v599 = vpack.c.b16 %v594, %v593
  %v600 = vpack.c.b16 %v596, %v595
  %vm605 = vcmask 523264
  %v607 = vsel %vm605, %v558, 0
  %v610 = vsel %vm605, %v559, 0
  %v613 = vsel %vm605, %v560, 0
  %v616 = vsel %vm605, %v561, 0
  %v619 = vsel %vm605, %v562, 0
  %v622 = vsel %vm605, %v563, 0
  %v625 = vsel %vm605, %v564, 0
  %v628 = vsel %vm605, %v565, 0
  %630 = vmatprep.subr.bf16.mxu0 0
  %631 = vmatpush1.bf16.msra.mxu0 0
  %632 = vmatprep.subr.bf16.mxu0 0
  %633 = vmatpush1.bf16.msra.mxu0 0
  %634 = vmatprep.subr.bf16.mxu0 0
  %635 = vmatpush1.bf16.msra.mxu0 0
  %636 = vmatprep.subr.bf16.mxu0 0
  %637 = vmatpush1.bf16.msra.mxu0 0
  %638 = vmatprep.subr.bf16.mxu0 0
  %639 = vmatpush1.bf16.msra.mxu0 %v600
  %640 = vmatprep.subr.bf16.mxu0 0
  %641 = vmatpush1.bf16.msra.mxu0 %v599
  %642 = vmatprep.subr.bf16.mxu0 0
  %643 = vmatpush1.bf16.msra.mxu0 %v598
  %644 = vmatprep.subr.bf16.mxu0 0
  %645 = vmatpush1.bf16.msra.mxu0 %v597
  %646 = vmatprep.subr.bf16.mxu0 0
  %647 = vmatpush2.bf16.msra.mxu0 0
  %648 = vmatprep.subr.bf16.mxu0 0
  %649 = vmatpush2.bf16.msra.mxu0 0
  %650 = vmatprep.subr.bf16.mxu0 0
  %651 = vmatpush2.bf16.msra.mxu0 0
  %652 = vmatprep.subr.bf16.mxu0 0
  %653 = vmatpush2.bf16.msra.mxu0 0
  %654 = vmatprep.subr.bf16.mxu0 0
  %655 = vmatpush2.bf16.msra.mxu0 0
  %656 = vmatprep.subr.bf16.mxu0 0
  %657 = vmatpush2.bf16.msra.mxu0 0
  %658 = vmatprep.subr.bf16.mxu0 0
  %659 = vmatpush2.bf16.msra.mxu0 0
  %660 = vmatprep.subr.bf16.mxu0 0
  %661 = vmatpush2.bf16.msra.mxu0 0
  %662 = vmatprep.mubr.bf16.mxu0 0
  %663 = vmatmul.mubr.bf16.gmra.mxu0 %v607
  %v664 = vpop.f32.mrf.mxu0
  %v665 = vadd.f32 %v579, %v664
  %v666 = vpop.f32.mrf.mxu0
  %v667 = vpop.f32.mrf.mxu0
  %v668 = vadd.f32 %v579, %v667
  %v669 = vpop.f32.mrf.mxu0
  %670 = vmatprep.mubr.bf16.mxu0 0
  %671 = vmatmul.mubr.bf16.gmra.mxu0 %v610
  %v672 = vpop.f32.mrf.mxu0
  %v673 = vadd.f32 %v579, %v672
  %v674 = vpop.f32.mrf.mxu0
  %v675 = vpop.f32.mrf.mxu0
  %v676 = vadd.f32 %v579, %v675
  %v677 = vpop.f32.mrf.mxu0
  %678 = vmatprep.mubr.bf16.mxu0 0
  %679 = vmatmul.mubr.bf16.gmra.mxu0 %v613
  %v680 = vpop.f32.mrf.mxu0
  %v681 = vadd.f32 %v579, %v680
  %v682 = vpop.f32.mrf.mxu0
  %v683 = vpop.f32.mrf.mxu0
  %v684 = vadd.f32 %v579, %v683
  %v685 = vpop.f32.mrf.mxu0
  %686 = vmatprep.mubr.bf16.mxu0 0
  %687 = vmatmul.mubr.bf16.gmra.mxu0 %v616
  %v688 = vpop.f32.mrf.mxu0
  %v689 = vadd.f32 %v579, %v688
  %v690 = vpop.f32.mrf.mxu0
  %v691 = vpop.f32.mrf.mxu0
  %v692 = vadd.f32 %v579, %v691
  %v693 = vpop.f32.mrf.mxu0
  %694 = vmatprep.mubr.bf16.mxu0 0
  %695 = vmatmul.mubr.bf16.gmra.mxu0 %v619
  %v696 = vpop.f32.mrf.mxu0
  %v697 = vadd.f32 %v579, %v696
  %v698 = vpop.f32.mrf.mxu0
  %v699 = vpop.f32.mrf.mxu0
  %v700 = vadd.f32 %v579, %v699
  %v701 = vpop.f32.mrf.mxu0
  %702 = vmatprep.mubr.bf16.mxu0 0
  %703 = vmatmul.mubr.bf16.gmra.mxu0 %v622
  %v704 = vpop.f32.mrf.mxu0
  %v705 = vadd.f32 %v579, %v704
  %v706 = vpop.f32.mrf.mxu0
  %v707 = vpop.f32.mrf.mxu0
  %v708 = vadd.f32 %v579, %v707
  %v709 = vpop.f32.mrf.mxu0
  %710 = vmatprep.mubr.bf16.mxu0 0
  %711 = vmatmul.mubr.bf16.gmra.mxu0 %v625
  %v712 = vpop.f32.mrf.mxu0
  %v713 = vadd.f32 %v579, %v712
  %v714 = vpop.f32.mrf.mxu0
  %v715 = vpop.f32.mrf.mxu0
  %v716 = vadd.f32 %v579, %v715
  %v717 = vpop.f32.mrf.mxu0
  %718 = vmatprep.mubr.bf16.mxu0 0
  %719 = vmatmul.mubr.bf16.gmra.mxu0 %v628
  %v720 = vpop.f32.mrf.mxu0
  %v721 = vadd.f32 %v579, %v720
  %v722 = vpop.f32.mrf.mxu0
  %v723 = vpop.f32.mrf.mxu0
  %v724 = vadd.f32 %v579, %v723
  %v725 = vpop.f32.mrf.mxu0
  %726 = vdwg.mxu0
  %v727 = vmax.f32 %v665, 0.0
  %v728 = vmax.f32 %v668, 0.0
  %v729 = vmax.f32 %v673, 0.0
  %v730 = vmax.f32 %v676, 0.0
  %v731 = vmax.f32 %v681, 0.0
  %v732 = vmax.f32 %v684, 0.0
  %v733 = vmax.f32 %v689, 0.0
  %v734 = vmax.f32 %v692, 0.0
  %v735 = vmax.f32 %v697, 0.0
  %v736 = vmax.f32 %v700, 0.0
  %v737 = vmax.f32 %v705, 0.0
  %v738 = vmax.f32 %v708, 0.0
  %v739 = vmax.f32 %v713, 0.0
  %v740 = vmax.f32 %v716, 0.0
  %v741 = vmax.f32 %v721, 0.0
  %v742 = vmax.f32 %v724, 0.0
  %v743 = vpack.c.bf16 %v728, %v727
  %v744 = vpack.c.bf16 %v730, %v729
  %v745 = vpack.c.bf16 %v732, %v731
  %v746 = vpack.c.bf16 %v734, %v733
  %v747 = vpack.c.bf16 %v736, %v735
  %v748 = vpack.c.bf16 %v738, %v737
  %v749 = vpack.c.bf16 %v740, %v739
  %v750 = vpack.c.bf16 %v742, %v741
  %v751 = vld [vmem:[%s8] sm:$0xf]
  %v752 = vld [vmem:[%s8 + $0x4] sm:$0xf]
  %v753 = vld [vmem:[%s8 + $0x8] sm:$0xf]
  %v754 = vld [vmem:[%s8 + $0xc] sm:$0xf]
  %v759 = vunpack.c.l.b16 %v751
  %v760 = vunpack.c.l.b16 %v752
  %v761 = vunpack.c.l.b16 %v753
  %v762 = vunpack.c.l.b16 %v754
  %v763 = vpack.c.b16 %v760, %v759
  %v764 = vpack.c.b16 %v762, %v761
  %v768 = vsel %vm228, %v743, 0
  %v771 = vsel %vm228, %v744, 0
  %v774 = vsel %vm228, %v745, 0
  %v777 = vsel %vm228, %v746, 0
  %v780 = vsel %vm228, %v747, 0
  %v783 = vsel %vm228, %v748, 0
  %v786 = vsel %vm228, %v749, 0
  %v789 = vsel %vm228, %v750, 0
  %791 = vmatprep.subr.bf16.mxu0 0
  %792 = vmatpush1.bf16.msra.mxu0 0
  %793 = vmatprep.subr.bf16.mxu0 0
  %794 = vmatpush1.bf16.msra.mxu0 0
  %795 = vmatprep.subr.bf16.mxu0 0
  %796 = vmatpush1.bf16.msra.mxu0 0
  %797 = vmatprep.subr.bf16.mxu0 0
  %798 = vmatpush1.bf16.msra.mxu0 0
  %799 = vmatprep.subr.bf16.mxu0 0
  %800 = vmatpush1.bf16.msra.mxu0 0
  %801 = vmatprep.subr.bf16.mxu0 0
  %802 = vmatpush1.bf16.msra.mxu0 0
  %803 = vmatprep.subr.bf16.mxu0 0
  %804 = vmatpush1.bf16.msra.mxu0 %v764
  %805 = vmatprep.subr.bf16.mxu0 0
  %806 = vmatpush1.bf16.msra.mxu0 %v763
  %807 = vmatprep.subr.bf16.mxu0 0
  %808 = vmatpush2.bf16.msra.mxu0 0
  %809 = vmatprep.subr.bf16.mxu0 0
  %810 = vmatpush2.bf16.msra.mxu0 0
  %811 = vmatprep.subr.bf16.mxu0 0
  %812 = vmatpush2.bf16.msra.mxu0 0
  %813 = vmatprep.subr.bf16.mxu0 0
  %814 = vmatpush2.bf16.msra.mxu0 0
  %815 = vmatprep.subr.bf16.mxu0 0
  %816 = vmatpush2.bf16.msra.mxu0 0
  %817 = vmatprep.subr.bf16.mxu0 0
  %818 = vmatpush2.bf16.msra.mxu0 0
  %819 = vmatprep.subr.bf16.mxu0 0
  %820 = vmatpush2.bf16.msra.mxu0 0
  %821 = vmatprep.subr.bf16.mxu0 0
  %822 = vmatpush2.bf16.msra.mxu0 0
  %823 = vmatprep.mubr.bf16.mxu0 0
  %824 = vmatmul.mubr.bf16.gmra.mxu0 %v768
  %v825 = vpop.f32.mrf.mxu0
  %v826 = vadd.f32 0.0, %v825
  %v827 = vpop.f32.mrf.mxu0
  %v828 = vpop.f32.mrf.mxu0
  %v829 = vadd.f32 0.0, %v828
  %v830 = vpop.f32.mrf.mxu0
  %831 = vmatprep.mubr.bf16.mxu0 0
  %832 = vmatmul.mubr.bf16.gmra.mxu0 %v771
  %v833 = vpop.f32.mrf.mxu0
  %v834 = vadd.f32 0.0, %v833
  %v835 = vpop.f32.mrf.mxu0
  %v836 = vpop.f32.mrf.mxu0
  %v837 = vadd.f32 0.0, %v836
  %v838 = vpop.f32.mrf.mxu0
  %839 = vmatprep.mubr.bf16.mxu0 0
  %840 = vmatmul.mubr.bf16.gmra.mxu0 %v774
  %v841 = vpop.f32.mrf.mxu0
  %v842 = vadd.f32 0.0, %v841
  %v843 = vpop.f32.mrf.mxu0
  %v844 = vpop.f32.mrf.mxu0
  %v845 = vadd.f32 0.0, %v844
  %v846 = vpop.f32.mrf.mxu0
  %847 = vmatprep.mubr.bf16.mxu0 0
  %848 = vmatmul.mubr.bf16.gmra.mxu0 %v777
  %v849 = vpop.f32.mrf.mxu0
  %v850 = vadd.f32 0.0, %v849
  %v851 = vpop.f32.mrf.mxu0
  %v852 = vpop.f32.mrf.mxu0
  %v853 = vadd.f32 0.0, %v852
  %v854 = vpop.f32.mrf.mxu0
  %855 = vmatprep.mubr.bf16.mxu0 0
  %856 = vmatmul.mubr.bf16.gmra.mxu0 %v780
  %v857 = vpop.f32.mrf.mxu0
  %v858 = vadd.f32 0.0, %v857
  %v859 = vpop.f32.mrf.mxu0
  %v860 = vpop.f32.mrf.mxu0
  %v861 = vadd.f32 0.0, %v860
  %v862 = vpop.f32.mrf.mxu0
  %863 = vmatprep.mubr.bf16.mxu0 0
  %864 = vmatmul.mubr.bf16.gmra.mxu0 %v783
  %v865 = vpop.f32.mrf.mxu0
  %v866 = vadd.f32 0.0, %v865
  %v867 = vpop.f32.mrf.mxu0
  %v868 = vpop.f32.mrf.mxu0
  %v869 = vadd.f32 0.0, %v868
  %v870 = vpop.f32.mrf.mxu0
  %871 = vmatprep.mubr.bf16.mxu0 0
  %872 = vmatmul.mubr.bf16.gmra.mxu0 %v786
  %v873 = vpop.f32.mrf.mxu0
  %v874 = vadd.f32 0.0, %v873
  %v875 = vpop.f32.mrf.mxu0
  %v876 = vpop.f32.mrf.mxu0
  %v877 = vadd.f32 0.0, %v876
  %v878 = vpop.f32.mrf.mxu0
  %879 = vmatprep.mubr.bf16.mxu0 0
  %880 = vmatmul.mubr.bf16.gmra.mxu0 %v789
  %v881 = vpop.f32.mrf.mxu0
  %v882 = vadd.f32 0.0, %v881
  %v883 = vpop.f32.mrf.mxu0
  %v884 = vpop.f32.mrf.mxu0
  %v885 = vadd.f32 0.0, %v884
  %v886 = vpop.f32.mrf.mxu0
  %887 = vdwg.mxu0
  %v908 = vunpack.c.l.b16 %v49
  %v909 = vunpack.c.l.b16 %v50
  %v910 = vunpack.c.l.b16 %v51
  %v911 = vunpack.c.l.b16 %v52
  %v912 = vunpack.c.l.b16 %v53
  %v913 = vunpack.c.l.b16 %v54
  %v914 = vunpack.c.l.b16 %v55
  %v915 = vunpack.c.l.b16 %v56
  %v916 = vunpack.c.l.b16 %v57
  %v917 = vunpack.c.l.b16 %v58
  %v918 = vunpack.c.l.b16 %v59
  %v919 = vunpack.c.l.b16 %v60
  %v920 = vunpack.c.l.b16 %v61
  %v921 = vunpack.c.l.b16 %v62
  %v922 = vunpack.c.l.b16 %v63
  %v923 = vunpack.c.l.b16 %v64
  %v924 = vunpack.c.l.b16 %v65
  %v925 = vunpack.c.l.b16 %v66
  %v926 = vunpack.c.l.b16 %v67
  %v927 = vunpack.c.l.b16 %v68
  %v928 = vpack.c.b16 %v909, %v908
  %v929 = vpack.c.b16 %v911, %v910
  %v930 = vpack.c.b16 %v913, %v912
  %v931 = vpack.c.b16 %v915, %v914
  %v932 = vpack.c.b16 %v917, %v916
  %v933 = vpack.c.b16 %v919, %v918
  %v934 = vpack.c.b16 %v921, %v920
  %v935 = vpack.c.b16 %v923, %v922
  %v936 = vpack.c.b16 %v925, %v924
  %v937 = vpack.c.b16 %v927, %v926
  %948 = vmatprep.subr.bf16.mxu0 0
  %949 = vmatpush1.bf16.msra.mxu0 %v935
  %950 = vmatprep.subr.bf16.mxu0 0
  %951 = vmatpush1.bf16.msra.mxu0 %v934
  %952 = vmatprep.subr.bf16.mxu0 0
  %953 = vmatpush1.bf16.msra.mxu0 %v933
  %954 = vmatprep.subr.bf16.mxu0 0
  %955 = vmatpush1.bf16.msra.mxu0 %v932
  %956 = vmatprep.subr.bf16.mxu0 0
  %957 = vmatpush1.bf16.msra.mxu0 %v931
  %958 = vmatprep.subr.bf16.mxu0 0
  %959 = vmatpush1.bf16.msra.mxu0 %v930
  %960 = vmatprep.subr.bf16.mxu0 0
  %961 = vmatpush1.bf16.msra.mxu0 %v929
  %962 = vmatprep.subr.bf16.mxu0 0
  %963 = vmatpush1.bf16.msra.mxu0 %v928
  %964 = vmatprep.subr.bf16.mxu0 0
  %965 = vmatpush2.bf16.msra.mxu0 0
  %966 = vmatprep.subr.bf16.mxu0 0
  %967 = vmatpush2.bf16.msra.mxu0 0
  %968 = vmatprep.subr.bf16.mxu0 0
  %969 = vmatpush2.bf16.msra.mxu0 0
  %970 = vmatprep.subr.bf16.mxu0 0
  %971 = vmatpush2.bf16.msra.mxu0 0
  %972 = vmatprep.subr.bf16.mxu0 0
  %973 = vmatpush2.bf16.msra.mxu0 0
  %974 = vmatprep.subr.bf16.mxu0 0
  %975 = vmatpush2.bf16.msra.mxu0 0
  %976 = vmatprep.subr.bf16.mxu0 0
  %977 = vmatpush2.bf16.msra.mxu0 %v937
  %978 = vmatprep.subr.bf16.mxu0 0
  %979 = vmatpush2.bf16.msra.mxu0 %v936
  %980 = vmatprep.mubr.bf16.mxu0 %v230
  %981 = vmatmul.mubr.bf16.gmra.mxu0 %v144
  %v982 = vpop.f32.mrf.mxu0
  %v983 = vadd.f32 %v826, %v982
  %v984 = vpop.f32.mrf.mxu0
  %v985 = vpop.f32.mrf.mxu0
  %v986 = vadd.f32 %v829, %v985
  %v987 = vpop.f32.mrf.mxu0
  %988 = vmatprep.mubr.bf16.mxu0 %v233
  %989 = vmatmul.mubr.bf16.gmra.mxu0 %v146
  %v990 = vpop.f32.mrf.mxu0
  %v991 = vadd.f32 %v834, %v990
  %v992 = vpop.f32.mrf.mxu0
  %v993 = vpop.f32.mrf.mxu0
  %v994 = vadd.f32 %v837, %v993
  %v995 = vpop.f32.mrf.mxu0
  %996 = vmatprep.mubr.bf16.mxu0 %v236
  %997 = vmatmul.mubr.bf16.gmra.mxu0 %v148
  %v998 = vpop.f32.mrf.mxu0
  %v999 = vadd.f32 %v842, %v998
  %v1000 = vpop.f32.mrf.mxu0
  %v1001 = vpop.f32.mrf.mxu0
  %v1002 = vadd.f32 %v845, %v1001
  %v1003 = vpop.f32.mrf.mxu0
  %1004 = vmatprep.mubr.bf16.mxu0 %v239
  %1005 = vmatmul.mubr.bf16.gmra.mxu0 %v150
  %v1006 = vpop.f32.mrf.mxu0
  %v1007 = vadd.f32 %v850, %v1006
  %v1008 = vpop.f32.mrf.mxu0
  %v1009 = vpop.f32.mrf.mxu0
  %v1010 = vadd.f32 %v853, %v1009
  %v1011 = vpop.f32.mrf.mxu0
  %1012 = vmatprep.mubr.bf16.mxu0 %v242
  %1013 = vmatmul.mubr.bf16.gmra.mxu0 %v152
  %v1014 = vpop.f32.mrf.mxu0
  %v1015 = vadd.f32 %v858, %v1014
  %v1016 = vpop.f32.mrf.mxu0
  %v1017 = vpop.f32.mrf.mxu0
  %v1018 = vadd.f32 %v861, %v1017
  %v1019 = vpop.f32.mrf.mxu0
  %1020 = vmatprep.mubr.bf16.mxu0 %v245
  %1021 = vmatmul.mubr.bf16.gmra.mxu0 %v154
  %v1022 = vpop.f32.mrf.mxu0
  %v1023 = vadd.f32 %v866, %v1022
  %v1024 = vpop.f32.mrf.mxu0
  %v1025 = vpop.f32.mrf.mxu0
  %v1026 = vadd.f32 %v869, %v1025
  %v1027 = vpop.f32.mrf.mxu0
  %1028 = vmatprep.mubr.bf16.mxu0 %v248
  %1029 = vmatmul.mubr.bf16.gmra.mxu0 %v156
  %v1030 = vpop.f32.mrf.mxu0
  %v1031 = vadd.f32 %v874, %v1030
  %v1032 = vpop.f32.mrf.mxu0
  %v1033 = vpop.f32.mrf.mxu0
  %v1034 = vadd.f32 %v877, %v1033
  %v1035 = vpop.f32.mrf.mxu0
  %1036 = vmatprep.mubr.bf16.mxu0 %v251
  %1037 = vmatmul.mubr.bf16.gmra.mxu0 %v158
  %v1038 = vpop.f32.mrf.mxu0
  %v1039 = vadd.f32 %v882, %v1038
  %v1040 = vpop.f32.mrf.mxu0
  %v1041 = vpop.f32.mrf.mxu0
  %v1042 = vadd.f32 %v885, %v1041
  %v1043 = vpop.f32.mrf.mxu0
  %1044 = vdwg.mxu0
  %v1045 = vxor.u32 %v983, 2147483648
  %v1046 = vxor.u32 %v986, 2147483648
  %v1047 = vxor.u32 %v991, 2147483648
  %v1048 = vxor.u32 %v994, 2147483648
  %v1049 = vxor.u32 %v999, 2147483648
  %v1050 = vxor.u32 %v1002, 2147483648
  %v1051 = vxor.u32 %v1007, 2147483648
  %v1052 = vxor.u32 %v1010, 2147483648
  %v1053 = vxor.u32 %v1015, 2147483648
  %v1054 = vxor.u32 %v1018, 2147483648
  %v1055 = vxor.u32 %v1023, 2147483648
  %v1056 = vxor.u32 %v1026, 2147483648
  %v1057 = vxor.u32 %v1031, 2147483648
  %v1058 = vxor.u32 %v1034, 2147483648
  %v1059 = vxor.u32 %v1039, 2147483648
  %v1060 = vxor.u32 %v1042, 2147483648
  %v1061 = vmul.f32 %v1045, 1.442695
  %v1062 = vpow.pop %v1061
  %v1063 = vmul.f32 %v1046, 1.442695
  %v1064 = vpow.pop %v1063
  %v1065 = vmul.f32 %v1047, 1.442695
  %v1066 = vpow.pop %v1065
  %v1067 = vmul.f32 %v1048, 1.442695
  %v1068 = vpow.pop %v1067
  %v1069 = vmul.f32 %v1049, 1.442695
  %v1070 = vpow.pop %v1069
  %v1071 = vmul.f32 %v1050, 1.442695
  %v1072 = vpow.pop %v1071
  %v1073 = vmul.f32 %v1051, 1.442695
  %v1074 = vpow.pop %v1073
  %v1075 = vmul.f32 %v1052, 1.442695
  %v1076 = vpow.pop %v1075
  %v1077 = vmul.f32 %v1053, 1.442695
  %v1078 = vpow.pop %v1077
  %v1079 = vmul.f32 %v1054, 1.442695
  %v1080 = vpow.pop %v1079
  %v1081 = vmul.f32 %v1055, 1.442695
  %v1082 = vpow.pop %v1081
  %v1083 = vmul.f32 %v1056, 1.442695
  %v1084 = vpow.pop %v1083
  %v1085 = vmul.f32 %v1057, 1.442695
  %v1086 = vpow.pop %v1085
  %v1087 = vmul.f32 %v1058, 1.442695
  %v1088 = vpow.pop %v1087
  %v1089 = vmul.f32 %v1059, 1.442695
  %v1090 = vpow.pop %v1089
  %v1091 = vmul.f32 %v1060, 1.442695
  %v1092 = vpow.pop %v1091
  %v1093 = vadd.f32 %v1062, 1.0
  %v1094 = vadd.f32 %v1064, 1.0
  %v1095 = vadd.f32 %v1066, 1.0
  %v1096 = vadd.f32 %v1068, 1.0
  %v1097 = vadd.f32 %v1070, 1.0
  %v1098 = vadd.f32 %v1072, 1.0
  %v1099 = vadd.f32 %v1074, 1.0
  %v1100 = vadd.f32 %v1076, 1.0
  %v1101 = vadd.f32 %v1078, 1.0
  %v1102 = vadd.f32 %v1080, 1.0
  %v1103 = vadd.f32 %v1082, 1.0
  %v1104 = vadd.f32 %v1084, 1.0
  %v1105 = vadd.f32 %v1086, 1.0
  %v1106 = vadd.f32 %v1088, 1.0
  %v1107 = vadd.f32 %v1090, 1.0
  %v1108 = vadd.f32 %v1092, 1.0
  %v1109 = vrcp.pop %v1093
  %v1110 = vmul.f32 1.0, %v1109
  %v1111 = vrcp.pop %v1094
  %v1112 = vmul.f32 1.0, %v1111
  %v1113 = vrcp.pop %v1095
  %v1114 = vmul.f32 1.0, %v1113
  %v1115 = vrcp.pop %v1096
  %v1116 = vmul.f32 1.0, %v1115
  %v1117 = vrcp.pop %v1097
  %v1118 = vmul.f32 1.0, %v1117
  %v1119 = vrcp.pop %v1098
  %v1120 = vmul.f32 1.0, %v1119
  %v1121 = vrcp.pop %v1099
  %v1122 = vmul.f32 1.0, %v1121
  %v1123 = vrcp.pop %v1100
  %v1124 = vmul.f32 1.0, %v1123
  %v1125 = vrcp.pop %v1101
  %v1126 = vmul.f32 1.0, %v1125
  %v1127 = vrcp.pop %v1102
  %v1128 = vmul.f32 1.0, %v1127
  %v1129 = vrcp.pop %v1103
  %v1130 = vmul.f32 1.0, %v1129
  %v1131 = vrcp.pop %v1104
  %v1132 = vmul.f32 1.0, %v1131
  %v1133 = vrcp.pop %v1105
  %v1134 = vmul.f32 1.0, %v1133
  %v1135 = vrcp.pop %v1106
  %v1136 = vmul.f32 1.0, %v1135
  %v1137 = vrcp.pop %v1107
  %v1138 = vmul.f32 1.0, %v1137
  %v1139 = vrcp.pop %v1108
  %v1140 = vmul.f32 1.0, %v1139
  %vm1141 = vcmask 7168
  %1142 = vst.msk [vmem:[%s9] sm:$0xff] %vm1141, %v1110
  %1143 = vst.msk [vmem:[%s9 + $0x8] sm:$0xff] %vm1141, %v1112
  %1144 = vst.msk [vmem:[%s9 + $0x10] sm:$0xff] %vm1141, %v1114
  %1145 = vst.msk [vmem:[%s9 + $0x18] sm:$0xff] %vm1141, %v1116
  %1146 = vst.msk [vmem:[%s9 + $0x20] sm:$0xff] %vm1141, %v1118
  %1147 = vst.msk [vmem:[%s9 + $0x28] sm:$0xff] %vm1141, %v1120
  %1148 = vst.msk [vmem:[%s9 + $0x30] sm:$0xff] %vm1141, %v1122
  %1149 = vst.msk [vmem:[%s9 + $0x38] sm:$0xff] %vm1141, %v1124
  %1150 = vst.msk [vmem:[%s9 + $0x40] sm:$0xff] %vm1141, %v1126
  %1151 = vst.msk [vmem:[%s9 + $0x48] sm:$0xff] %vm1141, %v1128
  %1152 = vst.msk [vmem:[%s9 + $0x50] sm:$0xff] %vm1141, %v1130
  %1153 = vst.msk [vmem:[%s9 + $0x58] sm:$0xff] %vm1141, %v1132
  %1154 = vst.msk [vmem:[%s9 + $0x60] sm:$0xff] %vm1141, %v1134
  %1155 = vst.msk [vmem:[%s9 + $0x68] sm:$0xff] %vm1141, %v1136
  %1156 = vst.msk [vmem:[%s9 + $0x70] sm:$0xff] %vm1141, %v1138
  %1157 = vst.msk [vmem:[%s9 + $0x78] sm:$0xff] %vm1141, %v1140
  // Predicated region
  $region38: #{tpu_custom_call.1} parent=0 // pred_check
    _
  $region39: #{tpu_custom_call.1} parent=0 // pred_check_branch
    %1159 = sbr.rel (0) target = $region41
  $region40: #{tpu_custom_call.1} parent=0 // pred_region
    _
  $region41: #{tpu_custom_call.1} parent=0 // pred_fallthru
    _
  // Predicated region
  $region42: #{tpu_custom_call.1} parent=0 // pred_check
    _
  $region43: #{tpu_custom_call.1} parent=0 // pred_check_branch
    %1161 = sbr.rel (0) target = $region45
  $region44: #{tpu_custom_call.1} parent=0 // pred_region
    _
  $region45: #{tpu_custom_call.1} parent=0 // pred_fallthru
    _

</llo_original>
